<compile_context>
chip_gen: v5e
topology: v5e:2x2
jax: 0.10.0
libtpu: 0.0.40
codegen_flags: <defaults>
</compile_context>

<pallas_src>
import functools

import jax
import jax.numpy as jnp
from jax.experimental import pallas as pl
from jax.experimental.pallas import tpu as pltpu


# ----------------------------------------------------------------------------
# Kernel 1: per-behavior user-side vector (no full item_proj writeback)
# ----------------------------------------------------------------------------
def _behavior_kernel(rel_ref, semb_ref, wwt_ref, z_ref, acc_ref):
    """Grid step (behavior t, item tile k).

    rel_ref : (B, TI)   bf16  relation rows for the batch users, behavior t
    semb_ref: (TI, Dp)  bf16  padded item-item embeddings tile, behavior t
    wwt_ref : (Dp, Dp)  bf16  W_t @ W_t^T  (resident across item tiles)
    z_ref   : (B, Dp)   f32   output: (rel[users] @ s_emb) @ (W W^T)
    acc_ref : (B, Dp)   f32   VMEM accumulator for rel[users] @ s_emb
    """
    k = pl.program_id(1)

    @pl.when(k == 0)
    def _init():
        acc_ref[...] = jnp.zeros_like(acc_ref)

    # bf16 x bf16 MXU path with f32 accumulation.
    acc_ref[...] += jnp.dot(rel_ref[...], semb_ref[...],
                            preferred_element_type=jnp.float32)

    @pl.when(k == pl.num_programs(1) - 1)
    def _finalize():
        z_ref[...] = jnp.dot(acc_ref[...].astype(jnp.bfloat16), wwt_ref[...],
                             preferred_element_type=jnp.float32)


def _pick_item_tile(num_items, batch, dp, vmem_budget=24 * 1024 * 1024):
    """Largest power-of-two tile that divides num_items and fits the budget.

    Budgeted against v7x's 64 MiB VMEM per TensorCore (scoped default 32 MiB):
    double-buffered bf16 rel + s_emb streams, resident (Dp, Dp) W W^T, f32
    accumulator and output block.
    """
    def vmem_need(ti):
        streams = 2 * (batch * ti * 2 + ti * dp * 2)        # double-buffered bf16
        resident = 2 * dp * dp * 2 + 3 * batch * dp * 4     # W W^T + out + acc
        return streams + resident

    for cand in (8192, 4096, 2048, 1024, 512, 256, 128):
        if num_items % cand == 0 and vmem_need(cand) <= vmem_budget:
            return cand
    return num_items   # full dim is always a legal block shape


def behavior_user_vectors(rel_u_all, s_emb_all_p, wwt_all):
    """z_raw[t] = (rel_t[users] @ s_emb_t) @ (W_t W_t^T)   for every behavior t."""
    T, B, I = rel_u_all.shape
    Dp = s_emb_all_p.shape[2]
    ti = _pick_item_tile(I, B, Dp)
    return pl.pallas_call(
        _behavior_kernel,
        out_shape=jax.ShapeDtypeStruct((T, B, Dp), jnp.float32),
        grid=(T, I // ti),
        in_specs=[
            pl.BlockSpec((None, B, ti), lambda t, k: (t, 0, k)),    # rel[users]
            pl.BlockSpec((None, ti, Dp), lambda t, k: (t, k, 0)),   # s_emb tile
            pl.BlockSpec((None, Dp, Dp), lambda t, k: (t, 0, 0)),   # W W^T resident
        ],
        out_specs=pl.BlockSpec((None, B, Dp), lambda t, k: (t, 0, 0)),
        scratch_shapes=[pltpu.VMEM((B, Dp), jnp.float32)],
        compiler_params=pltpu.CompilerParams(
            # T maps the behaviors onto v7x's 2 TensorCores (T=2 is balanced);
            # the item axis accumulates into the resident output -> "arbitrary".
            dimension_semantics=("parallel", "arbitrary"),
            vmem_limit_bytes=32 * 1024 * 1024),
    )(rel_u_all, s_emb_all_p, wwt_all)


# ----------------------------------------------------------------------------
# Kernel 2: fused score1 + score2 + lamb blend (matmul-free, batch-tiled)
# ----------------------------------------------------------------------------
def _score_kernel(u_ref, i_ref, semb_ref, z_ref, scores_ref, *, lamb, inv_t):
    """One batch tile.

    u_ref     : (tb, Dp)        f32   gathered user embeddings (zero-padded)
    i_ref     : (tb, M, Dp)     f32   gathered item embeddings
    semb_ref  : (T, tb, M, Dp)  bf16  s_emb gathered at the batch items
    z_ref     : (T, tb, Dp)     f32   inv-degree-scaled user-side vectors
    scores_ref: (tb, M)         f32
    """
    T = semb_ref.shape[0]
    u = u_ref[...]
    it = i_ref[...]
    score1 = jnp.sum(u[:, None, :] * it, axis=2)                      # (tb, M)
    score2 = jnp.zeros_like(score1)
    for t in range(T):                                                # static unroll
        score2 = score2 + jnp.sum(
            z_ref[t][:, None, :] * semb_ref[t].astype(jnp.float32), axis=2)
    scores_ref[...] = lamb * score1 + (1.0 - lamb) * score2 * inv_t


def _pick_batch_tile(batch):
    for cand in (256, 128):
        if batch % cand == 0:
            return cand
    return batch


def score_combine(u_g_p, i_g_p, semb_g, z_all, *, lamb, num_behaviors):
    B, M, Dp = i_g_p.shape
    T = semb_g.shape[0]
    tb = _pick_batch_tile(B)
    kernel = functools.partial(_score_kernel, lamb=float(lamb),
                               inv_t=1.0 / float(num_behaviors))
    return pl.pallas_call(
        kernel,
        out_shape=jax.ShapeDtypeStruct((B, M), jnp.float32),
        grid=(B // tb,),
        in_specs=[
            pl.BlockSpec((tb, Dp), lambda b: (b, 0)),
            pl.BlockSpec((tb, M, Dp), lambda b: (b, 0, 0)),
            pl.BlockSpec((T, tb, M, Dp), lambda b: (0, b, 0, 0)),
            pl.BlockSpec((T, tb, Dp), lambda b: (0, b, 0)),
        ],
        out_specs=pl.BlockSpec((tb, M), lambda b: (b, 0)),
        compiler_params=pltpu.CompilerParams(
            dimension_semantics=("parallel",),
            vmem_limit_bytes=32 * 1024 * 1024),
    )(u_g_p, i_g_p, semb_g, z_all)


# ----------------------------------------------------------------------------
# Model (deterministic synthetic parameters matching ModelBase.__init__ shapes)
# ----------------------------------------------------------------------------
def xavier_normal(key, shape):
    # torch.nn.init.xavier_normal_ for a 2-D (fan_out, fan_in) tensor
    fan_out, fan_in = shape
    std = (2.0 / (fan_in + fan_out)) ** 0.5
    return std * jax.random.normal(key, shape, dtype=jnp.float32)


def _pad_last(x, dp):
    pad = dp - x.shape[-1]
    if pad == 0:
        return x
    return jnp.pad(x, [(0, 0)] * (x.ndim - 1) + [(0, pad)])


class MBGCNBase:
    """JAX/Pallas port of ModelBase.forward."""

    def __init__(self, key, num_users, num_items, embed_size,
                 num_behaviors=2, lamb=0.5, L2_norm=1e-4):
        self.num_users = num_users
        self.num_items = num_items
        self.embed_size = embed_size
        self.embed_pad = max(128, ((embed_size + 127) // 128) * 128)   # lane-dense D
        self.num_behaviors = num_behaviors
        self.lamb = lamb
        self.L2_norm = L2_norm

        keys = jax.random.split(key, 2 + 2 * num_behaviors)
        # create_embeddings=True branch: xavier_normal_ user/item embeddings.
        self.user_embedding = xavier_normal(keys[0], (num_users, embed_size))
        self.item_embedding = xavier_normal(keys[1], (num_items, embed_size))
        # TODO(synk): the torch.load pretrained-embedding branch
        # (create_embeddings=False) is intentionally not reproduced.

        self.relation_dict = {}
        self.item_behavior_W_score = {}
        degs, wwts = [], []
        for t in range(num_behaviors):
            rel = jax.random.bernoulli(keys[2 + 2 * t], 0.1,
                                       (num_users, num_items)).astype(jnp.float32)
            degs.append(rel.sum(axis=1))
            # 0/1 relation matrix is lossless in bf16 -> halves the HBM stream.
            self.relation_dict[t] = rel.astype(jnp.bfloat16)
            w = xavier_normal(keys[3 + 2 * t], (embed_size, embed_size))
            self.item_behavior_W_score[t] = w
            wwts.append(w @ w.T)                     # W W^T, computed once in f32
        self.user_behavior_degree = jnp.stack(degs, axis=1)            # (U, T)

        # Stacked / padded / bf16 kernel-side parameter views (built once).
        self.rel_all = jnp.stack([self.relation_dict[t]
                                  for t in range(num_behaviors)])       # (T, U, I) bf16
        wwt = jnp.stack(wwts)                                           # (T, D, D)
        pad = self.embed_pad - embed_size
        wwt = jnp.pad(wwt, ((0, 0), (0, pad), (0, pad)))
        self.wwt_all = wwt.astype(jnp.bfloat16)                         # (T, Dp, Dp)

    def propagate(self):
        # TODO(synk): `propagate` is abstract in ModelBase (subclasses implement
        # multi-layer graph propagation); use the raw embeddings as a
        # deterministic identity stand-in so forward() is well defined.
        ii = {t: self.item_embedding for t in range(self.num_behaviors)}
        return self.user_embedding, self.item_embedding, ii

    # ------------------------------------------------------------------ forward
    def forward(self, users, items):
        B = users.shape[0]
        M = items.shape[1]
        T = self.num_behaviors
        Dp = self.embed_pad

        user_final, item_final, ii_dict = self.propagate()

        # ---- gathers / padding: plain-JAX glue --------------------------------
        u_gather = user_final[users]                                    # (B, D)
        i_gather = item_final[items]                                    # (B, M, D)
        u_g_p = _pad_last(u_gather, Dp)                                 # (B, Dp)
        i_g_p = _pad_last(i_gather, Dp)                                 # (B, M, Dp)

        rel_u_all = self.rel_all[:, users, :]                           # (T, B, I) bf16
        # In a real subclass the propagated s_emb would be produced directly in
        # this padded bf16 layout once per step; here the pad/cast is glue.
        s_emb_all = jnp.stack([ii_dict[t] for t in range(T)])           # (T, I, D)
        s_emb_all_p = _pad_last(s_emb_all, Dp).astype(jnp.bfloat16)     # (T, I, Dp)

        # ---- kernel 1: z_raw[t] = (rel_t[users] @ s_emb_t) @ (W_t W_t^T) ------
        z_raw = behavior_user_vectors(rel_u_all, s_emb_all_p, self.wwt_all)

        # Row-wise 1/(deg+eps) applied on the tiny (T, B, Dp) result.  Row scaling
        # commutes with right-multiplication, so this exactly reproduces the
        # reference's scaling of user_item_agg before the W projection.
        eps = 1e-8
        inv_deg = 1.0 / (self.user_behavior_degree[users].astype(jnp.float32) + eps)
        z_all = z_raw * jnp.transpose(inv_deg)[:, :, None]              # (T, B, Dp)

        # Item-side behavior embeddings gathered only at the batch items
        # (no full (B, num_items) score matrix, no full item_proj).
        semb_g = s_emb_all_p[:, items.reshape(-1), :].reshape(T, B, M, Dp)

        # ---- kernel 2: fused score1 + behavior-mean score2 + lamb blend -------
        scores = score_combine(u_g_p, i_g_p, semb_g, z_all,
                               lamb=self.lamb, num_behaviors=T)

        # L2 term (tiny scalar reduction; the reference counts the user row M
        # times because it expands it to (B, M, D) before squaring).
        l2 = self.L2_norm * (M * jnp.sum(u_gather ** 2) + jnp.sum(i_gather ** 2))
        return scores, l2

    # --------------------------------------------------------------- reference
    def reference_forward(self, users, items):
        """Pure-JAX reference mirroring the PyTorch forward (for validation)."""
        B, M = items.shape
        user_final, item_final, ii_dict = self.propagate()
        batch_user_emb = jnp.broadcast_to(user_final[users][:, None, :],
                                          (B, M, self.embed_size))
        batch_item_emb = item_final[items]
        score1 = jnp.sum(batch_user_emb * batch_item_emb, axis=2)
        score2 = jnp.zeros((B, M), jnp.float32)
        eps = 1e-8
        for t in range(self.num_behaviors):
            s_emb = ii_dict[t]
            rel = self.relation_dict[t].astype(jnp.float32)
            user_deg = self.user_behavior_degree[:, t][:, None] + eps
            user_item_agg = (rel @ s_emb) / user_deg
            proj = self.item_behavior_W_score[t]
            user_proj = user_item_agg @ proj
            item_proj = s_emb @ proj
            full = user_proj[users] @ item_proj.T
            score2 = score2 + jnp.take_along_axis(full, items, axis=1)
        score2 = score2 / self.num_behaviors
        scores = self.lamb * score1 + (1 - self.lamb) * score2
        l2 = self.L2_norm * ((batch_user_emb ** 2).sum() + (batch_item_emb ** 2).sum())
        return scores, l2


# ----------------------------------------------------------------------------
# Driver
# ----------------------------------------------------------------------------
if __name__ == "__main__":
    key = jax.random.PRNGKey(0)
    k_model, k_users, k_items = jax.random.split(key, 3)

    num_users, num_items, embed_size = 64, 384, 32    # 384 -> 3 item tiles of 128
    batch, items_per_user = 8, 4

    model = MBGCNBase(k_model, num_users, num_items, embed_size,
                      num_behaviors=2, lamb=0.5, L2_norm=1e-4)

    users = jax.random.randint(k_users, (batch,), 0, num_users, dtype=jnp.int32)
    items = jax.random.randint(k_items, (batch, items_per_user), 0, num_items,
                               dtype=jnp.int32)

    scores, l2_loss = model.forward(users, items)
    scores = jax.block_until_ready(scores)
    l2_loss = jax.block_until_ready(l2_loss)

    ref_scores, ref_l2 = model.reference_forward(users, items)
    assert scores.shape == (batch, items_per_user)
    # bf16 parameter/activation streams in the kernels vs. the f32 reference.
    assert bool(jnp.allclose(scores, ref_scores, rtol=1e-2, atol=1e-2))
    assert bool(jnp.allclose(l2_loss, ref_l2, rtol=1e-2, atol=1e-2))

    print("KERNEL_OK")
</pallas_src>

<mosaic_0001>
module attributes {stable_mosaic.version = 11 : i64} {
  func.func @_behavior_kernel(%arg0: i32, %arg1: i32, %arg2: memref<1x8x128xbf16, #tpu.memory_space<vmem>>, %arg3: memref<1x128x128xbf16, #tpu.memory_space<vmem>>, %arg4: memref<1x128x128xbf16, #tpu.memory_space<vmem>>, %arg5: memref<1x8x128xf32, #tpu.memory_space<vmem>>, %arg6: memref<8x128xf32, #tpu.memory_space<vmem>>) attributes {dimension_semantics = [#tpu.dimension_semantics<parallel>, #tpu.dimension_semantics<arbitrary>], iteration_bounds = array<i64: 2, 3>, scalar_prefetch = 0 : i64, scratch_operands = 1 : i64, tpu.core_type = #tpu.core_type<tc>, window_params = [{transform_indices = @transform_0, window_bounds = array<i64: 1, 8, 128>}, {transform_indices = @transform_1, window_bounds = array<i64: 1, 128, 128>}, {transform_indices = @transform_2, window_bounds = array<i64: 1, 128, 128>}, {transform_indices = @transform_3, window_bounds = array<i64: 1, 8, 128>}]} {
    %c0_i32 = arith.constant 0 : i32
    %0 = arith.cmpi eq, %arg1, %c0_i32 : i32
    %1 = arith.extui %0 : i1 to i32
    %c0_i32_0 = arith.constant 0 : i32
    %2 = arith.cmpi ne, %1, %c0_i32_0 : i32
    scf.if %2 {
      %cst_11 = arith.constant 0.000000e+00 : f32
      %14 = vector.broadcast %cst_11 : f32 to vector<8x128xf32>
      %c0_12 = arith.constant 0 : index
      %c0_13 = arith.constant 0 : index
      %15 = vector.load %arg6[%c0_12, %c0_13] : memref<8x128xf32, #tpu.memory_space<vmem>>, vector<8x128xf32>
      tpu.vector_store %arg6[%c0_12, %c0_13], %14 {strides = array<i32>} : memref<8x128xf32, #tpu.memory_space<vmem>>, vector<8x128xf32>,
    } else {
    }
    %c0 = arith.constant 0 : index
    %c0_1 = arith.constant 0 : index
    %3 = vector.load %arg6[%c0, %c0_1] : memref<8x128xf32, #tpu.memory_space<vmem>>, vector<8x128xf32>
    %c0_2 = arith.constant 0 : index
    %c0_3 = arith.constant 0 : index
    %c0_4 = arith.constant 0 : index
    %4 = vector.load %arg2[%c0_2, %c0_3, %c0_4] : memref<1x8x128xbf16, #tpu.memory_space<vmem>>, vector<1x8x128xbf16>
    %5 = vector.shape_cast %4 : vector<1x8x128xbf16> to vector<8x128xbf16>
    %c0_5 = arith.constant 0 : index
    %c0_6 = arith.constant 0 : index
    %c0_7 = arith.constant 0 : index
    %6 = vector.load %arg3[%c0_5, %c0_6, %c0_7] : memref<1x128x128xbf16, #tpu.memory_space<vmem>>, vector<1x128x128xbf16>
    %7 = vector.shape_cast %6 : vector<1x128x128xbf16> to vector<128x128xbf16>
    %cst = arith.constant dense<0.000000e+00> : vector<8x128xf32>
    %8 = tpu.matmul %5, %7, %cst {dimension_numbers = #tpu.dot_dimension_numbers<[1], [0], [0], [1], [0, 0, 1, 1], [], []>} : vector<8x128xbf16>, vector<128x128xbf16>, vector<8x128xf32> -> vector<8x128xf32>
    %9 = arith.addf %3, %8 : vector<8x128xf32>
    %c0_8 = arith.constant 0 : index
    %c0_9 = arith.constant 0 : index
    %10 = vector.load %arg6[%c0_8, %c0_9] : memref<8x128xf32, #tpu.memory_space<vmem>>, vector<8x128xf32>
    tpu.vector_store %arg6[%c0_8, %c0_9], %9 {strides = array<i32>} : memref<8x128xf32, #tpu.memory_space<vmem>>, vector<8x128xf32>,
    %c2_i32 = arith.constant 2 : i32
    %11 = arith.cmpi eq, %arg1, %c2_i32 : i32
    %12 = arith.extui %11 : i1 to i32
    %c0_i32_10 = arith.constant 0 : i32
    %13 = arith.cmpi ne, %12, %c0_i32_10 : i32
    scf.if %13 {
      %c0_11 = arith.constant 0 : index
      %c0_12 = arith.constant 0 : index
      %14 = vector.load %arg6[%c0_11, %c0_12] : memref<8x128xf32, #tpu.memory_space<vmem>>, vector<8x128xf32>
      %15 = arith.truncf %14 : vector<8x128xf32> to vector<8x128xbf16>
      %c0_13 = arith.constant 0 : index
      %c0_14 = arith.constant 0 : index
      %c0_15 = arith.constant 0 : index
      %16 = vector.load %arg4[%c0_13, %c0_14, %c0_15] : memref<1x128x128xbf16, #tpu.memory_space<vmem>>, vector<1x128x128xbf16>
      %17 = vector.shape_cast %16 : vector<1x128x128xbf16> to vector<128x128xbf16>
      %cst_16 = arith.constant dense<0.000000e+00> : vector<8x128xf32>
      %18 = tpu.matmul %15, %17, %cst_16 {dimension_numbers = #tpu.dot_dimension_numbers<[1], [0], [0], [1], [0, 0, 1, 1], [], []>} : vector<8x128xbf16>, vector<128x128xbf16>, vector<8x128xf32> -> vector<8x128xf32>
      %c0_17 = arith.constant 0 : index
      %c0_18 = arith.constant 0 : index
      %c0_19 = arith.constant 0 : index
      %19 = vector.load %arg5[%c0_17, %c0_18, %c0_19] : memref<1x8x128xf32, #tpu.memory_space<vmem>>, vector<1x8x128xf32>
      %20 = vector.shape_cast %19 : vector<1x8x128xf32> to vector<8x128xf32>
      %21 = vector.shape_cast %18 : vector<8x128xf32> to vector<1x8x128xf32>
      tpu.vector_store %arg5[%c0_17, %c0_18, %c0_19], %21 {strides = array<i32>} : memref<1x8x128xf32, #tpu.memory_space<vmem>>, vector<1x8x128xf32>,
    } else {
    }
    return
  }
  func.func @transform_0(%arg0: i32, %arg1: i32) -> (i32, i32, i32) {
    %c0_i32 = arith.constant 0 : i32
    %c0_i32_0 = arith.constant 0 : i32
    return %arg0, %c0_i32, %arg1 : i32, i32, i32
  }
  func.func @transform_1(%arg0: i32, %arg1: i32) -> (i32, i32, i32) {
    %c0_i32 = arith.constant 0 : i32
    %c0_i32_0 = arith.constant 0 : i32
    return %arg0, %arg1, %c0_i32 : i32, i32, i32
  }
  func.func @transform_2(%arg0: i32, %arg1: i32) -> (i32, i32, i32) {
    %c0_i32 = arith.constant 0 : i32
    %c0_i32_0 = arith.constant 0 : i32
    %c0_i32_1 = arith.constant 0 : i32
    return %arg0, %c0_i32, %c0_i32_0 : i32, i32, i32
  }
  func.func @transform_3(%arg0: i32, %arg1: i32) -> (i32, i32, i32) {
    %c0_i32 = arith.constant 0 : i32
    %c0_i32_0 = arith.constant 0 : i32
    %c0_i32_1 = arith.constant 0 : i32
    return %arg0, %c0_i32, %c0_i32_0 : i32, i32, i32
  }
}

</mosaic_0001>

<llo_original>
// kernel: tpu_custom_call.1
$region0: #{tpu_custom_call.1}
  #allocation0 [shape = 'u32[]', space=smem, size = 0x4, offset = 0x4, fixed_abs, tag = 'smem constant byte address 0x4 - core index']
  #allocation1 [shape = 'u32[72,128]{1,0:T(1,128)}', space=vmem, size = 0x9000, scoped, tag = 'internal scratch']
  #allocation2 [shape = 'f32[8,128]{1,0:T(8,128)}', space=vmem, size = 0x1000, scoped, tag = 'scratch operand']
  %s0 = inlined_call_operand.hbm [shape: bf16[2,8,384], index: 0, kind: input, shape index: {}]
  %s1 = inlined_call_operand.hbm [shape: bf16[2,384,128], index: 1, kind: input, shape index: {}]
  %s2 = inlined_call_operand.hbm [shape: bf16[2,128,128], index: 2, kind: input, shape index: {}]
  %s3 = inlined_call_operand.hbm [shape: f32[2,8,128], index: 3, kind: output, shape index: {}]
  %s4 = sld [smem:[#allocation0]]
  $region65: #{tpu_custom_call.1} parent=0
    _
  %s6 = ssub.s32 1, %s4
  %s7 = scalar_select 0, %s6, %s4
  $region1: #{tpu_custom_call.1} parent=0
    #allocation3 [shape = 'u8[4096]{0}', space=vmem, size = 0x1000, scoped, tag = 'input window, operand 0']
    #allocation4 [shape = 's32[2]{0}', space=sflag, size = 0x8, scoped, tag = 'scoped memory for tpu_custom_call.1']
    #allocation5 [shape = 's32[2]{0}', space=sflag, size = 0x8, scoped, tag = 'scoped memory for tpu_custom_call.1']
    #allocation6 [shape = 'u8[65536]{0}', space=vmem, size = 0x10000, scoped, tag = 'input window, operand 1']
    #allocation7 [shape = 's32[2]{0}', space=sflag, size = 0x8, scoped, tag = 'scoped memory for tpu_custom_call.1']
    #allocation8 [shape = 'u8[65536]{0}', space=vmem, size = 0x10000, scoped, tag = 'input window, operand 2']
    #allocation9 [shape = 'u8[8192]{0}', space=vmem, size = 0x2000, scoped, tag = 'output window, operand 0']
    %8 = vsyncpa [#allocation4], 0
    %s9 = scalar_lea.sflag [#allocation4], 1
    %10 = vsyncpa %s9, 0
    %11 = vsyncpa [#allocation7], 0
    %s12 = scalar_lea.sflag [#allocation7], 1
    %13 = vsyncpa %s12, 0
    %14 = vsyncpa [#allocation5], 0
    %s15 = scalar_lea.sflag [#allocation5], 1
    %16 = vsyncpa %s15, 0
    loop: start=0, step=1, limit=8
    $region2: #{tpu_custom_call.1} parent=1 // loop_pre_header
      _
    $region3: #{tpu_custom_call.1} parent=1 // loop_header
      %s18 = sphi 0, %s22
      %p19 = scmp.ge.s32.totalorder %s18, 8
      %s25 = sphi 0, %s37
      %s26 = sphi 0, %s33
      %s27 = sphi 0, %s25
      %s28 = sphi 0, %s26
      %s29 = sphi 0, %s27
      %s30 = sphi 0, %s28
      %s42 = sphi 0, %s44
      %s45 = sphi 0, %s42
      %s46 = sphi 0, %s45
      %s62 = sphi 0, %s46
      %s70 = sphi 0, %s72
      %s73 = sphi 0, %s70
      %s74 = sphi 0, %s73
      %s90 = sphi 0, %s74
      %s96 = sphi 0, %s98
      %s99 = sphi 0, %s96
      %s100 = sphi 0, %s99
      %s116 = sphi 0, %s100
      %s122 = sphi 0, %s124
      %s125 = sphi 0, %s122
      %s126 = sphi 0, %s125
      %s142 = sphi 0, %s126
    $region4: #{tpu_custom_call.1} parent=1 // loop_header_branch
      %21 = sbr.rel (%p19) target = $region8
    $region5: #{tpu_custom_call.1} parent=1 // loop_body
      %s23 = ssub.s32 %s18, 1
      %s24 = ssub.s32 %s18, 2
      %s31 = sadd.s32 1, %s26
      %p32 = scmp.ge.s32.totalorder %s31, 3
      %s33 = scalar_select %p32, 0, %s31
      %s34 = sadd.s32 1, %s25
      %s35 = scalar_select %p32, %s34, %s25
      %p36 = scmp.ge.s32.totalorder %s35, 2
      %s37 = scalar_select %p36, 0, %s35
      %s38 = ssub.s32 %s25, %s37
      %s39 = ssub.s32 %s26, %s33
      %s40 = sor.u32 %s38, %s39
      %p41 = scmp.eq.s32.totalorder %s40, 0
      %s43 = sadd.s32 %s42, 1
      %s44 = scalar_select %p41, %s42, %s43
      %p47 = pneg %p41
      %p48 = scmp.eq.s32.totalorder %s18, 5
      %p49 = por %p47, %p48
      %p50 = scmp.ne.s32.totalorder %s42, %s45
      %p51 = scmp.eq.s32.totalorder %s18, 0
      %p52 = por %p50, %p51
      %p53 = scmp.ne.s32.totalorder %s42, %s45
      %p54 = scmp.eq.s32.totalorder %s23, 5
      %p55 = por %p53, %p54
      %p56 = scmp.ne.s32.totalorder %s45, %s46
      %p57 = scmp.eq.s32.totalorder %s23, 0
      %p58 = por %p56, %p57
      %p59 = scmp.ne.s32.totalorder %s45, %s46
      %p60 = scmp.eq.s32.totalorder %s24, 5
      %p61 = por %p59, %p60
      %p63 = scmp.ne.s32.totalorder %s46, %s62
      %p64 = scmp.eq.s32.totalorder %s24, 0
      %p65 = por %p63, %p64
      %s66 = ssub.s32 %s25, %s37
      %s67 = ssub.s32 %s26, %s33
      %s68 = sor.u32 %s66, %s67
      %p69 = scmp.eq.s32.totalorder %s68, 0
      %s71 = sadd.s32 %s70, 1
      %s72 = scalar_select %p69, %s70, %s71
      %p75 = pneg %p69
      %p76 = scmp.eq.s32.totalorder %s18, 5
      %p77 = por %p75, %p76
      %p78 = scmp.ne.s32.totalorder %s70, %s73
      %p79 = scmp.eq.s32.totalorder %s18, 0
      %p80 = por %p78, %p79
      %p81 = scmp.ne.s32.totalorder %s70, %s73
      %p82 = scmp.eq.s32.totalorder %s23, 5
      %p83 = por %p81, %p82
      %p84 = scmp.ne.s32.totalorder %s73, %s74
      %p85 = scmp.eq.s32.totalorder %s23, 0
      %p86 = por %p84, %p85
      %p87 = scmp.ne.s32.totalorder %s73, %s74
      %p88 = scmp.eq.s32.totalorder %s24, 5
      %p89 = por %p87, %p88
      %p91 = scmp.ne.s32.totalorder %s74, %s90
      %p92 = scmp.eq.s32.totalorder %s24, 0
      %p93 = por %p91, %p92
      %s94 = ssub.s32 %s25, %s37
      %p95 = scmp.eq.s32.totalorder %s94, 0
      %s97 = sadd.s32 %s96, 1
      %s98 = scalar_select %p95, %s96, %s97
      %p101 = pneg %p95
      %p102 = scmp.eq.s32.totalorder %s18, 5
      %p103 = por %p101, %p102
      %p104 = scmp.ne.s32.totalorder %s96, %s99
      %p105 = scmp.eq.s32.totalorder %s18, 0
      %p106 = por %p104, %p105
      %p107 = scmp.ne.s32.totalorder %s96, %s99
      %p108 = scmp.eq.s32.totalorder %s23, 5
      %p109 = por %p107, %p108
      %p110 = scmp.ne.s32.totalorder %s99, %s100
      %p111 = scmp.eq.s32.totalorder %s23, 0
      %p112 = por %p110, %p111
      %p113 = scmp.ne.s32.totalorder %s99, %s100
      %p114 = scmp.eq.s32.totalorder %s24, 5
      %p115 = por %p113, %p114
      %p117 = scmp.ne.s32.totalorder %s100, %s116
      %p118 = scmp.eq.s32.totalorder %s24, 0
      %p119 = por %p117, %p118
      %s120 = ssub.s32 %s25, %s37
      %p121 = scmp.eq.s32.totalorder %s120, 0
      %s123 = sadd.s32 %s122, 1
      %s124 = scalar_select %p121, %s122, %s123
      %p127 = pneg %p121
      %p128 = scmp.eq.s32.totalorder %s18, 5
      %p129 = por %p127, %p128
      %p130 = scmp.ne.s32.totalorder %s122, %s125
      %p131 = scmp.eq.s32.totalorder %s18, 0
      %p132 = por %p130, %p131
      %p133 = scmp.ne.s32.totalorder %s122, %s125
      %p134 = scmp.eq.s32.totalorder %s23, 5
      %p135 = por %p133, %p134
      %p136 = scmp.ne.s32.totalorder %s125, %s126
      %p137 = scmp.eq.s32.totalorder %s23, 0
      %p138 = por %p136, %p137
      %p139 = scmp.ne.s32.totalorder %s125, %s126
      %p140 = scmp.eq.s32.totalorder %s24, 5
      %p141 = por %p139, %p140
      %p143 = scmp.ne.s32.totalorder %s126, %s142
      %p144 = scmp.eq.s32.totalorder %s24, 0
      %p145 = por %p143, %p144
      %p146 = scmp.le.s32.totalorder 1, %s18
      %p147 = scmp.lt.s32.totalorder %s18, 7
      %p148 = pnand %p146, %p147
      %p149 = pneg %p148
      // Predicated region
      $region9: #{tpu_custom_call.1} parent=5 // pred_check
        _
      $region10: #{tpu_custom_call.1} parent=5 // pred_check_branch
        %151 = sbr.rel (%p148) target = $region12
      $region11: #{tpu_custom_call.1} parent=5 // pred_region
        %s152 = ssub.s32 %s18, 1
      $region12: #{tpu_custom_call.1} parent=5 // pred_fallthru
        _
      %p153 = scmp.lt.s32.totalorder %s18, 6
      // Predicated region
      $region13: #{tpu_custom_call.1} parent=5 // pred_check
        %p154 = pneg %p153
      $region14: #{tpu_custom_call.1} parent=5 // pred_check_branch
        %156 = sbr.rel (%p154) target = $region16
      $region15: #{tpu_custom_call.1} parent=5 // pred_region
        // Predicated region
        $region17: #{tpu_custom_call.1} parent=15 // pred_check
          %p157 = pneg %p52
        $region18: #{tpu_custom_call.1} parent=15 // pred_check_branch
          %159 = sbr.rel (%p157) target = $region20
        $region19: #{tpu_custom_call.1} parent=15 // pred_region
          %s160 = sand.u32 %s42, 1
          %s161 = scalar_lea.sflag [#allocation4], %s160
          %s162 = sand.u32 %s42, 1
          %s163 = smul.addr %s162, 4
          %s164 = scalar_lea.vmem [#allocation3], %s163
          %166 = vsyncadd %s161, 0
          %s167 = smul.addr %s25, 3
          %s168 = sadd.s32 %s26, %s167
          %s169 = smul.addr %s168, 4
          %s170 = scalar_lea.hbm %s0, %s169
          %s172 = sshll.u32 %s170, 4
          %s173 = int_to_ptr.hbm [resolvable:$true] %s172
          %s174 = sshll.u32 %s164, 4
          %s175 = int_to_ptr.vmem [resolvable:$true] %s174
          %177 = dma.hbm_to_vmem [thread:$0]  %s173, 64, %s175, %s161
        $region20: #{tpu_custom_call.1} parent=15 // pred_fallthru
          _
        // Predicated region
        $region21: #{tpu_custom_call.1} parent=15 // pred_check
          %p178 = pneg %p80
        $region22: #{tpu_custom_call.1} parent=15 // pred_check_branch
          %180 = sbr.rel (%p178) target = $region24
        $region23: #{tpu_custom_call.1} parent=15 // pred_region
          %s181 = sand.u32 %s18, 1
          %s182 = scalar_lea.sflag [#allocation7], %s181
          %s183 = sand.u32 %s70, 1
          %s184 = smul.addr %s183, 64
          %s185 = scalar_lea.vmem [#allocation6], %s184
          %s186 = smul.u32 16, %s26
          %188 = vsyncadd %s182, 0
          %s189 = smul.addr %s25, 48
          %s190 = sadd.s32 %s186, %s189
          %s191 = smul.addr %s190, 4
          %s192 = scalar_lea.hbm %s1, %s191
          %s193 = sshll.u32 %s192, 4
          %s194 = int_to_ptr.hbm [resolvable:$true] %s193
          %s195 = sshll.u32 %s185, 4
          %s196 = int_to_ptr.vmem [resolvable:$true] %s195
          %201 = dma.hbm_to_vmem [thread:$0]  %s194, 1024, %s196, %s182, 64, 64, 4
        $region24: #{tpu_custom_call.1} parent=15 // pred_fallthru
          _
        // Predicated region
        $region25: #{tpu_custom_call.1} parent=15 // pred_check
          %p202 = pneg %p106
        $region26: #{tpu_custom_call.1} parent=15 // pred_check_branch
          %204 = sbr.rel (%p202) target = $region28
        $region27: #{tpu_custom_call.1} parent=15 // pred_region
          %s205 = sand.u32 %s18, 1
          %s206 = scalar_lea.sflag [#allocation7], %s205
          %s207 = sand.u32 %s96, 1
          %s208 = smul.addr %s207, 64
          %s209 = scalar_lea.vmem [#allocation8], %s208
          %211 = vsyncadd %s206, 0
          %s212 = smul.addr %s25, 16
          %s213 = smul.addr %s212, 4
          %s214 = scalar_lea.hbm %s2, %s213
          %s215 = sshll.u32 %s214, 4
          %s216 = int_to_ptr.hbm [resolvable:$true] %s215
          %s217 = sshll.u32 %s209, 4
          %s218 = int_to_ptr.vmem [resolvable:$true] %s217
          %223 = dma.hbm_to_vmem [thread:$0]  %s216, 1024, %s218, %s206, 64, 64, 4
        $region28: #{tpu_custom_call.1} parent=15 // pred_fallthru
          _
      $region16: #{tpu_custom_call.1} parent=5 // pred_fallthru
        _
      %p224 = scmp.le.s32.totalorder 1, %s18
      %p225 = scmp.lt.s32.totalorder %s18, 7
      %p226 = pnand %p224, %p225
      %p227 = pneg %p226
      // Predicated region
      $region29: #{tpu_custom_call.1} parent=5 // pred_check
        _
      $region30: #{tpu_custom_call.1} parent=5 // pred_check_branch
        %229 = sbr.rel (%p226) target = $region32
      $region31: #{tpu_custom_call.1} parent=5 // pred_region
        %s230 = ssub.s32 %s18, 1
        %s231 = sand.u32 %s45, 1
        %s232 = scalar_lea.sflag [#allocation4], %s231
        %s233 = sand.u32 %s45, 1
        %s234 = smul.addr %s233, 4
        %s235 = scalar_lea.vmem [#allocation3], %s234
        // Predicated region
        $region33: #{tpu_custom_call.1} parent=31 // pred_check
          %p236 = pneg %p58
        $region34: #{tpu_custom_call.1} parent=31 // pred_check_branch
          %238 = sbr.rel (%p236) target = $region36
        $region35: #{tpu_custom_call.1} parent=31 // pred_region
          %240 = dma.done %s232, 64
        $region36: #{tpu_custom_call.1} parent=31 // pred_fallthru
          _
        %s241 = sand.u32 %s23, 1
        %s242 = scalar_lea.sflag [#allocation7], %s241
        %s243 = sand.u32 %s73, 1
        %s244 = smul.addr %s243, 64
        %s245 = scalar_lea.vmem [#allocation6], %s244
        // Predicated region
        $region37: #{tpu_custom_call.1} parent=31 // pred_check
          %p246 = pneg %p86
        $region38: #{tpu_custom_call.1} parent=31 // pred_check_branch
          %248 = sbr.rel (%p246) target = $region40
        $region39: #{tpu_custom_call.1} parent=31 // pred_region
          %250 = dma.done %s242, 1024
        $region40: #{tpu_custom_call.1} parent=31 // pred_fallthru
          _
        %s251 = sand.u32 %s23, 1
        %s252 = scalar_lea.sflag [#allocation7], %s251
        %s253 = sand.u32 %s99, 1
        %s254 = smul.addr %s253, 64
        %s255 = scalar_lea.vmem [#allocation8], %s254
        // Predicated region
        $region41: #{tpu_custom_call.1} parent=31 // pred_check
          %p256 = pneg %p112
        $region42: #{tpu_custom_call.1} parent=31 // pred_check_branch
          %258 = sbr.rel (%p256) target = $region44
        $region43: #{tpu_custom_call.1} parent=31 // pred_region
          %260 = dma.done %s252, 1024
        $region44: #{tpu_custom_call.1} parent=31 // pred_fallthru
          _
        %s261 = sand.u32 %s45, 1
        %s262 = scalar_lea.sflag [#allocation4], %s261
        %s263 = sand.u32 %s45, 1
        %s264 = smul.addr %s263, 4
        %s265 = scalar_lea.vmem [#allocation3], %s264
        %p266 = pneg %p58
        %p267 = pneg %p55
        %s268 = sand.u32 %s23, 1
        %s269 = scalar_lea.sflag [#allocation7], %s268
        %s270 = sand.u32 %s73, 1
        %s271 = smul.addr %s270, 64
        %s272 = scalar_lea.vmem [#allocation6], %s271
        %p273 = pneg %p86
        %p274 = pneg %p83
        %s275 = sand.u32 %s23, 1
        %s276 = scalar_lea.sflag [#allocation7], %s275
        %s277 = sand.u32 %s99, 1
        %s278 = smul.addr %s277, 64
        %s279 = scalar_lea.vmem [#allocation8], %s278
        %p280 = pneg %p112
        %p281 = pneg %p109
        %p282 = pneg %p138
        %p283 = pneg %p135
        %s284 = sand.u32 %s125, 1
        %s285 = scalar_lea.sflag [#allocation5], %s284
        %s286 = sand.u32 %s125, 1
        %s287 = smul.addr %s286, 8
        %s288 = scalar_lea.vmem [#allocation9], %s287
        %s289 = smul.u32 16, %s28
        %p290 = scmp.eq.s32.totalorder %s28, 0
        // Predicated region
        $region45: #{tpu_custom_call.1} parent=31 // pred_check
          %p291 = pneg %p290
        $region46: #{tpu_custom_call.1} parent=31 // pred_check_branch
          %293 = sbr.rel (%p291) target = $region48
        $region47: #{tpu_custom_call.1} parent=31 // pred_region
          %294 = vst [vmem:[#allocation2] sm:$0xff] 0.0
        $region48: #{tpu_custom_call.1} parent=31 // pred_fallthru
          _
        %v295 = vld [vmem:[#allocation2] sm:$0xff]
        %v296 = vld [vmem:[%s235] sm:$0xf]
        %v297 = vld [vmem:[%s245] sm:$0xf]
        %v298 = vld [vmem:[%s245 + $0x4] sm:$0xf]
        %v299 = vld [vmem:[%s245 + $0x8] sm:$0xf]
        %v300 = vld [vmem:[%s245 + $0xc] sm:$0xf]
        %v301 = vld [vmem:[%s245 + $0x10] sm:$0xf]
        %v302 = vld [vmem:[%s245 + $0x14] sm:$0xf]
        %v303 = vld [vmem:[%s245 + $0x18] sm:$0xf]
        %v304 = vld [vmem:[%s245 + $0x1c] sm:$0xf]
        %v305 = vld [vmem:[%s245 + $0x20] sm:$0xf]
        %v306 = vld [vmem:[%s245 + $0x24] sm:$0xf]
        %v307 = vld [vmem:[%s245 + $0x28] sm:$0xf]
        %v308 = vld [vmem:[%s245 + $0x2c] sm:$0xf]
        %v309 = vld [vmem:[%s245 + $0x30] sm:$0xf]
        %v310 = vld [vmem:[%s245 + $0x34] sm:$0xf]
        %v311 = vld [vmem:[%s245 + $0x38] sm:$0xf]
        %v312 = vld [vmem:[%s245 + $0x3c] sm:$0xf]
        %v329 = vunpack.c.l.b16 %v297
        %v330 = vunpack.c.l.b16 %v298
        %v331 = vunpack.c.l.b16 %v299
        %v332 = vunpack.c.l.b16 %v300
        %v333 = vunpack.c.l.b16 %v301
        %v334 = vunpack.c.l.b16 %v302
        %v335 = vunpack.c.l.b16 %v303
        %v336 = vunpack.c.l.b16 %v304
        %v337 = vunpack.c.l.b16 %v305
        %v338 = vunpack.c.l.b16 %v306
        %v339 = vunpack.c.l.b16 %v307
        %v340 = vunpack.c.l.b16 %v308
        %v341 = vunpack.c.l.b16 %v309
        %v342 = vunpack.c.l.b16 %v310
        %v343 = vunpack.c.l.b16 %v311
        %v344 = vunpack.c.l.b16 %v312
        %v345 = vpack.c.b16 %v330, %v329
        %v346 = vpack.c.b16 %v332, %v331
        %v347 = vpack.c.b16 %v334, %v333
        %v348 = vpack.c.b16 %v336, %v335
        %v349 = vpack.c.b16 %v338, %v337
        %v350 = vpack.c.b16 %v340, %v339
        %v351 = vpack.c.b16 %v342, %v341
        %v352 = vpack.c.b16 %v344, %v343
        %361 = vmatpush.bf16.msra.mxu0 %v352
        %362 = vmatpush.bf16.msra.mxu0 %v351
        %363 = vmatpush.bf16.msra.mxu0 %v350
        %364 = vmatpush.bf16.msra.mxu0 %v349
        %365 = vmatpush.bf16.msra.mxu0 %v348
        %366 = vmatpush.bf16.msra.mxu0 %v347
        %367 = vmatpush.bf16.msra.mxu0 %v346
        %368 = vmatpush.bf16.msra.mxu0 %v345
        %369 = vmatmul.bf16.gmra.mxu0 %v296
        %v370 = vpop.f32.mrf.mxu0
        %v371 = vadd.f32 0.0, %v370
        %v372 = vpop.f32.mrf.mxu0
        %373 = vdwg.mxu0
        %v374 = vadd.f32 %v295, %v371
        %375 = vst [vmem:[#allocation2] sm:$0xff] %v374
        %p376 = scmp.eq.s32.totalorder %s28, 2
        // Predicated region
        $region49: #{tpu_custom_call.1} parent=31 // pred_check
          %p377 = pneg %p376
        $region50: #{tpu_custom_call.1} parent=31 // pred_check_branch
          %379 = sbr.rel (%p377) target = $region52
        $region51: #{tpu_custom_call.1} parent=31 // pred_region
          %v380 = vld [vmem:[#allocation2] sm:$0xff]
          %v381 = vpack.c.bf16 %v380, %v380
          %v382 = vld [vmem:[%s255] sm:$0xf]
          %v383 = vld [vmem:[%s255 + $0x4] sm:$0xf]
          %v384 = vld [vmem:[%s255 + $0x8] sm:$0xf]
          %v385 = vld [vmem:[%s255 + $0xc] sm:$0xf]
          %v386 = vld [vmem:[%s255 + $0x10] sm:$0xf]
          %v387 = vld [vmem:[%s255 + $0x14] sm:$0xf]
          %v388 = vld [vmem:[%s255 + $0x18] sm:$0xf]
          %v389 = vld [vmem:[%s255 + $0x1c] sm:$0xf]
          %v390 = vld [vmem:[%s255 + $0x20] sm:$0xf]
          %v391 = vld [vmem:[%s255 + $0x24] sm:$0xf]
          %v392 = vld [vmem:[%s255 + $0x28] sm:$0xf]
          %v393 = vld [vmem:[%s255 + $0x2c] sm:$0xf]
          %v394 = vld [vmem:[%s255 + $0x30] sm:$0xf]
          %v395 = vld [vmem:[%s255 + $0x34] sm:$0xf]
          %v396 = vld [vmem:[%s255 + $0x38] sm:$0xf]
          %v397 = vld [vmem:[%s255 + $0x3c] sm:$0xf]
          %v414 = vunpack.c.l.b16 %v382
          %v415 = vunpack.c.l.b16 %v383
          %v416 = vunpack.c.l.b16 %v384
          %v417 = vunpack.c.l.b16 %v385
          %v418 = vunpack.c.l.b16 %v386
          %v419 = vunpack.c.l.b16 %v387
          %v420 = vunpack.c.l.b16 %v388
          %v421 = vunpack.c.l.b16 %v389
          %v422 = vunpack.c.l.b16 %v390
          %v423 = vunpack.c.l.b16 %v391
          %v424 = vunpack.c.l.b16 %v392
          %v425 = vunpack.c.l.b16 %v393
          %v426 = vunpack.c.l.b16 %v394
          %v427 = vunpack.c.l.b16 %v395
          %v428 = vunpack.c.l.b16 %v396
          %v429 = vunpack.c.l.b16 %v397
          %v430 = vpack.c.b16 %v415, %v414
          %v431 = vpack.c.b16 %v417, %v416
          %v432 = vpack.c.b16 %v419, %v418
          %v433 = vpack.c.b16 %v421, %v420
          %v434 = vpack.c.b16 %v423, %v422
          %v435 = vpack.c.b16 %v425, %v424
          %v436 = vpack.c.b16 %v427, %v426
          %v437 = vpack.c.b16 %v429, %v428
          %446 = vmatpush.bf16.msra.mxu0 %v437
          %447 = vmatpush.bf16.msra.mxu0 %v436
          %448 = vmatpush.bf16.msra.mxu0 %v435
          %449 = vmatpush.bf16.msra.mxu0 %v434
          %450 = vmatpush.bf16.msra.mxu0 %v433
          %451 = vmatpush.bf16.msra.mxu0 %v432
          %452 = vmatpush.bf16.msra.mxu0 %v431
          %453 = vmatpush.bf16.msra.mxu0 %v430
          %454 = vmatmul.bf16.gmra.mxu0 %v381
          %v455 = vpop.f32.mrf.mxu0
          %v456 = vadd.f32 0.0, %v455
          %v457 = vpop.f32.mrf.mxu0
          %458 = vdwg.mxu0
          %459 = vst [vmem:[%s288] sm:$0xff] %v456
        $region52: #{tpu_custom_call.1} parent=31 // pred_fallthru
          _
        %s460 = sand.u32 %s125, 1
        %s461 = scalar_lea.sflag [#allocation5], %s460
        %s462 = sand.u32 %s125, 1
        %s463 = smul.addr %s462, 8
        %s464 = scalar_lea.vmem [#allocation9], %s463
        // Predicated region
        $region53: #{tpu_custom_call.1} parent=31 // pred_check
          %p465 = pneg %p135
        $region54: #{tpu_custom_call.1} parent=31 // pred_check_branch
          %467 = sbr.rel (%p465) target = $region56
        $region55: #{tpu_custom_call.1} parent=31 // pred_region
          %469 = vsyncadd %s461, 0
          %s470 = smul.addr %s27, 8
          %s471 = scalar_lea.hbm %s3, %s470
          %s473 = sshll.u32 %s464, 4
          %s474 = int_to_ptr.vmem [resolvable:$true] %s473
          %s475 = sshll.u32 %s471, 4
          %s476 = int_to_ptr.hbm [resolvable:$true] %s475
          %478 = dma.vmem_to_hbm [thread:$0]  %s474, 128, %s476, %s461
        $region56: #{tpu_custom_call.1} parent=31 // pred_fallthru
          _
      $region32: #{tpu_custom_call.1} parent=5 // pred_fallthru
        _
      %p479 = scmp.le.s32.totalorder 2, %s18
      // Predicated region
      $region57: #{tpu_custom_call.1} parent=5 // pred_check
        %p480 = pneg %p479
      $region58: #{tpu_custom_call.1} parent=5 // pred_check_branch
        %482 = sbr.rel (%p480) target = $region60
      $region59: #{tpu_custom_call.1} parent=5 // pred_region
        %s483 = ssub.s32 %s18, 2
        // Predicated region
        $region61: #{tpu_custom_call.1} parent=59 // pred_check
          %p484 = pneg %p141
        $region62: #{tpu_custom_call.1} parent=59 // pred_check_branch
          %486 = sbr.rel (%p484) target = $region64
        $region63: #{tpu_custom_call.1} parent=59 // pred_region
          %s487 = sand.u32 %s126, 1
          %s488 = scalar_lea.sflag [#allocation5], %s487
          %s489 = sand.u32 %s126, 1
          %s490 = smul.addr %s489, 8
          %s491 = scalar_lea.vmem [#allocation9], %s490
          %493 = dma.done %s488, 128
        $region64: #{tpu_custom_call.1} parent=59 // pred_fallthru
          _
      $region60: #{tpu_custom_call.1} parent=5 // pred_fallthru
        _
    $region6: #{tpu_custom_call.1} parent=1 // loop_footer
      %s22 = sadd.s32 1, %s18
    $region7: #{tpu_custom_call.1} parent=1 // loop_footer_branch
      %17 = sbr.rel target = $region3
    $region8: #{tpu_custom_call.1} parent=1 // loop_exit
      _
    %494 = vsyncpa [#allocation4], 1
    %s495 = scalar_lea.sflag [#allocation4], 1
    %496 = vsyncpa %s495, 1
    %497 = vsyncpa [#allocation7], 1
    %s498 = scalar_lea.sflag [#allocation7], 1
    %499 = vsyncpa %s498, 1
    %500 = vsyncpa [#allocation5], 1
    %s501 = scalar_lea.sflag [#allocation5], 1
    %502 = vsyncpa %s501, 1

</llo_original>
